<compile_context>
chip_gen: v6e
topology: v6e:2x2x1
jax: 0.10.0
libtpu: 0.0.40
codegen_flags: <defaults>
</compile_context>

<pallas_src>
import functools

import jax
import jax.numpy as jnp
import numpy as np
from jax import lax
from jax.experimental import pallas as pl
from jax.experimental.pallas import tpu as pltpu


def _linear_attention_kernel(x_ref, wk_ref, wv_ref, wq_ref, wout_ref,
                             bout_ref, mask_ref, o_ref, *, n_valid):
    # x_ref:    (TB, C, Np)   current batch tile (Np = padded spatial)
    # wk_ref:   (HD, C)  bf16    wv_ref: (HD, C) bf16    wq_ref: (HD, C) bf16
    # wout_ref: (C, HD)  bf16
    # bout_ref: (C, 1)   f32
    # mask_ref: (HD, HD) f32   per-head block-diagonal mask (1.0 / 0.0)
    # o_ref:    (TB, C, Np)
    tb, c, n_pad = x_ref.shape

    w_k = wk_ref[...]
    w_v = wv_ref[...]
    w_q = wq_ref[...]
    w_out = wout_ref[...]
    bias = bout_ref[...]
    head_mask = mask_ref[...]

    # Lane-validity mask for padded spatial columns; (1, Np) and broadcast.
    if n_pad != n_valid:
        col = lax.broadcasted_iota(jnp.int32, (1, n_pad), 1)
        valid = col < n_valid
    else:
        valid = None

    def compute(t):
        x = x_ref[t]                                   # (C, Np) f32
        x_bf = x.astype(jnp.bfloat16)

        # ---- k projection (MXU, K padded from C) + softmax over spatial ---
        k = jnp.dot(w_k, x_bf, preferred_element_type=jnp.float32)  # (HD, Np)
        if valid is not None:
            k = jnp.where(valid, k, -jnp.inf)
        k = jnp.exp(k - jnp.max(k, axis=-1, keepdims=True))
        k = k * pl.reciprocal(jnp.sum(k, axis=-1, keepdims=True), approx=True)
        k_bf = k.astype(jnp.bfloat16)

        # ---- v projection ---------------------------------------------------
        v_bf = jnp.dot(w_v, x_bf,
                       preferred_element_type=jnp.float32).astype(jnp.bfloat16)

        # ---- merged block-diagonal context: ctx_t[j,i] = sum_n v[j,n]k[i,n] -
        ctx_t = lax.dot_general(v_bf, k_bf, (((1,), (1,)), ((), ())),
                                preferred_element_type=jnp.float32)  # (HD, HD)
        # Zero cross-head terms, fused with the bf16 cast.
        ctx_bf = (ctx_t * head_mask).astype(jnp.bfloat16)

        # ---- fold W_out and W_q into the (small) masked context ------------
        #   y = ((W_out @ ctx_masked) @ W_q) @ x + b
        m = jnp.dot(w_out, ctx_bf, preferred_element_type=jnp.float32)  # (C, HD)
        mw = jnp.dot(m.astype(jnp.bfloat16), w_q,
                     preferred_element_type=jnp.float32)                # (C, C)

        if c <= 16:
            # Tiny contraction dim: C broadcast FMAs on the VPU (f32 x,
            # ~2 live vregs) instead of a heavily padded MXU pass.
            y = mw[:, 0:1] * x[0:1, :]
            for cc in range(1, c):
                y = y + mw[:, cc:cc + 1] * x[cc:cc + 1, :]
            y = y + bias
        else:
            y = jnp.dot(mw.astype(jnp.bfloat16), x_bf,
                        preferred_element_type=jnp.float32) + bias
        o_ref[t] = y.astype(o_ref.dtype)

    if tb == 1:
        compute(0)
    else:
        def body(t, carry):
            compute(t)
            return carry
        lax.fori_loop(0, tb, body, 0, unroll=2)


def linear_attention_pallas(x, w_qkv, w_out, b_out, *, heads, dim_head,
                            batch_block=1):
    b, c, h, w = x.shape
    n = h * w
    hid = heads * dim_head
    assert w_qkv.shape == (3 * hid, c)
    assert w_out.shape == (c, hid)

    # Keep >= 2 "parallel" grid steps whenever the batch allows (v7x has two
    # TensorCores per chip); also make the block divide the batch.
    tb = max(1, min(batch_block, b // 2 if b >= 2 else 1))
    while b % tb != 0:
        tb -= 1

    # Lane-dense spatial axis: pad N up to a multiple of 128.
    n_pad = ((n + 127) // 128) * 128
    x_flat = x.reshape(b, c, n)
    if n_pad != n:
        x_flat = jnp.pad(x_flat, ((0, 0), (0, 0), (0, n_pad - n)))

    # Constant operands: pre-cast weights to bf16 once; bias stays f32.
    w_q_bf = w_qkv[0:hid].astype(jnp.bfloat16)          # (HD, C)
    w_k_bf = w_qkv[hid:2 * hid].astype(jnp.bfloat16)    # (HD, C)
    w_v_bf = w_qkv[2 * hid:3 * hid].astype(jnp.bfloat16)
    w_out_bf = w_out.astype(jnp.bfloat16)               # (C, HD)
    b_out2d = b_out.reshape(c, 1)

    # Per-head block-diagonal mask, precomputed on the host.
    hrow = np.arange(hid) // dim_head
    head_mask = jnp.asarray((hrow[:, None] == hrow[None, :]).astype(np.float32))

    kernel = functools.partial(_linear_attention_kernel, n_valid=n)

    out_flat = pl.pallas_call(
        kernel,
        out_shape=jax.ShapeDtypeStruct((b, c, n_pad), x.dtype),
        grid=(b // tb,),
        in_specs=[
            pl.BlockSpec((tb, c, n_pad), lambda i: (i, 0, 0)),   # x
            pl.BlockSpec((hid, c), lambda i: (0, 0)),            # W_k (bf16)
            pl.BlockSpec((hid, c), lambda i: (0, 0)),            # W_v (bf16)
            pl.BlockSpec((hid, c), lambda i: (0, 0)),            # W_q (bf16)
            pl.BlockSpec((c, hid), lambda i: (0, 0)),            # W_out (bf16)
            pl.BlockSpec((c, 1), lambda i: (0, 0)),              # b_out (f32)
            pl.BlockSpec((hid, hid), lambda i: (0, 0)),          # head mask
        ],
        out_specs=pl.BlockSpec((tb, c, n_pad), lambda i: (i, 0, 0)),
        compiler_params=pltpu.CompilerParams(
            dimension_semantics=("parallel",),
            vmem_limit_bytes=32 * 1024 * 1024),
    )(x_flat, w_k_bf, w_v_bf, w_q_bf, w_out_bf, b_out2d, head_mask)

    if n_pad != n:
        out_flat = out_flat[:, :, :n]
    return out_flat.reshape(b, c, h, w)


def linear_attention_ref(x, w_qkv, w_out, b_out, *, heads, dim_head):
    """Pure-JAX f32 reference matching the PyTorch forward."""
    b, c, h, w = x.shape
    n = h * w
    xf = x.reshape(b, c, n)
    qkv = jnp.einsum('oc,bcn->bon', w_qkv, xf)
    qkv = qkv.reshape(b, 3, heads, dim_head, n)
    q, k, v = qkv[:, 0], qkv[:, 1], qkv[:, 2]
    k = jax.nn.softmax(k, axis=-1)
    context = jnp.einsum('bhdn,bhen->bhde', k, v)
    out = jnp.einsum('bhde,bhdn->bhen', context, q)
    out = out.reshape(b, heads * dim_head, n)
    y = jnp.einsum('oc,bcn->bon', w_out, out) + b_out[None, :, None]
    return y.reshape(b, c, h, w)


if __name__ == "__main__":
    # Module config: LinearAttention(dim=4, heads=4, dim_head=32)
    dim = 4
    heads = 4
    dim_head = 32
    hidden = heads * dim_head            # 128

    key = jax.random.PRNGKey(0)
    k_x1, k_x2, k_x3, k_wqkv, k_wout, k_bout = jax.random.split(key, 6)

    # Conv2d(dim, hidden*3, 1, bias=False).weight -> (3*hidden, dim)
    w_qkv = jax.random.normal(k_wqkv, (3 * hidden, dim), dtype=jnp.float32) * 0.05
    # Conv2d(hidden, dim, 1).weight -> (dim, hidden); bias -> (dim,)
    w_out = jax.random.normal(k_wout, (dim, hidden), dtype=jnp.float32) * 0.05
    b_out = jax.random.normal(k_bout, (dim,), dtype=jnp.float32) * 0.05

    # bf16 MXU operands (f32 accumulation) -> compare at a bf16-appropriate
    # tolerance against the f32 reference.
    RTOL = ATOL = 2e-2

    # Case 1: B=2, 16x16 (N=256, lane-aligned), grid=(2,) so both v7x TCs work.
    x1 = jax.random.normal(k_x1, (2, dim, 16, 16), dtype=jnp.float32)
    y1 = jax.block_until_ready(
        linear_attention_pallas(x1, w_qkv, w_out, b_out,
                                heads=heads, dim_head=dim_head))
    r1 = linear_attention_ref(x1, w_qkv, w_out, b_out,
                              heads=heads, dim_head=dim_head)
    np.testing.assert_allclose(np.asarray(y1), np.asarray(r1),
                               rtol=RTOL, atol=ATOL)

    # Case 2: B=2, 12x12 (N=144 -> padded to 256, exercises the spatial mask).
    # The batch_block=2 request is clamped to 1 so the grid keeps 2 parallel
    # steps (v7x has 2 TensorCores).
    x2 = jax.random.normal(k_x2, (2, dim, 12, 12), dtype=jnp.float32)
    y2 = jax.block_until_ready(
        linear_attention_pallas(x2, w_qkv, w_out, b_out,
                                heads=heads, dim_head=dim_head, batch_block=2))
    r2 = linear_attention_ref(x2, w_qkv, w_out, b_out,
                              heads=heads, dim_head=dim_head)
    np.testing.assert_allclose(np.asarray(y2), np.asarray(r2),
                               rtol=RTOL, atol=ATOL)

    # Case 3: B=4 with batch_block=2 -> tb=2 (in-kernel batch loop), grid=(2,).
    x3 = jax.random.normal(k_x3, (4, dim, 12, 12), dtype=jnp.float32)
    y3 = jax.block_until_ready(
        linear_attention_pallas(x3, w_qkv, w_out, b_out,
                                heads=heads, dim_head=dim_head, batch_block=2))
    r3 = linear_attention_ref(x3, w_qkv, w_out, b_out,
                              heads=heads, dim_head=dim_head)
    np.testing.assert_allclose(np.asarray(y3), np.asarray(r3),
                               rtol=RTOL, atol=ATOL)

    print("KERNEL_OK")
</pallas_src>

<mosaic_0001>
module attributes {stable_mosaic.version = 11 : i64} {
  func.func @_linear_attention_kernel(%arg0: i32, %arg1: memref<1x4x256xf32, #tpu.memory_space<vmem>>, %arg2: memref<128x4xbf16, #tpu.memory_space<vmem>>, %arg3: memref<128x4xbf16, #tpu.memory_space<vmem>>, %arg4: memref<128x4xbf16, #tpu.memory_space<vmem>>, %arg5: memref<4x128xbf16, #tpu.memory_space<vmem>>, %arg6: memref<4x1xf32, #tpu.memory_space<vmem>>, %arg7: memref<128x128xf32, #tpu.memory_space<vmem>>, %arg8: memref<1x4x256xf32, #tpu.memory_space<vmem>>) attributes {dimension_semantics = [#tpu.dimension_semantics<parallel>], iteration_bounds = array<i64: 2>, scalar_prefetch = 0 : i64, scratch_operands = 0 : i64, tpu.core_type = #tpu.core_type<tc>, window_params = [{transform_indices = @transform_0, window_bounds = array<i64: 1, 4, 256>}, {pipeline_mode = #tpu.pipeline_mode<synchronous>, transform_indices = @transform_1, window_bounds = array<i64: 128, 4>}, {pipeline_mode = #tpu.pipeline_mode<synchronous>, transform_indices = @transform_2, window_bounds = array<i64: 128, 4>}, {pipeline_mode = #tpu.pipeline_mode<synchronous>, transform_indices = @transform_3, window_bounds = array<i64: 128, 4>}, {pipeline_mode = #tpu.pipeline_mode<synchronous>, transform_indices = @transform_4, window_bounds = array<i64: 4, 128>}, {pipeline_mode = #tpu.pipeline_mode<synchronous>, transform_indices = @transform_5, window_bounds = array<i64: 4, 1>}, {pipeline_mode = #tpu.pipeline_mode<synchronous>, transform_indices = @transform_6, window_bounds = array<i64: 128, 128>}, {transform_indices = @transform_7, window_bounds = array<i64: 1, 4, 256>}]} {
    %c0 = arith.constant 0 : index
    %c0_0 = arith.constant 0 : index
    %0 = vector.load %arg2[%c0, %c0_0] : memref<128x4xbf16, #tpu.memory_space<vmem>>, vector<128x4xbf16>
    %c0_1 = arith.constant 0 : index
    %c0_2 = arith.constant 0 : index
    %1 = vector.load %arg3[%c0_1, %c0_2] : memref<128x4xbf16, #tpu.memory_space<vmem>>, vector<128x4xbf16>
    %c0_3 = arith.constant 0 : index
    %c0_4 = arith.constant 0 : index
    %2 = vector.load %arg4[%c0_3, %c0_4] : memref<128x4xbf16, #tpu.memory_space<vmem>>, vector<128x4xbf16>
    %c0_5 = arith.constant 0 : index
    %c0_6 = arith.constant 0 : index
    %3 = vector.load %arg5[%c0_5, %c0_6] : memref<4x128xbf16, #tpu.memory_space<vmem>>, vector<4x128xbf16>
    %c0_7 = arith.constant 0 : index
    %c0_8 = arith.constant 0 : index
    %4 = vector.load %arg6[%c0_7, %c0_8] : memref<4x1xf32, #tpu.memory_space<vmem>>, vector<4x1xf32>
    %c0_9 = arith.constant 0 : index
    %c0_10 = arith.constant 0 : index
    %5 = vector.load %arg7[%c0_9, %c0_10] : memref<128x128xf32, #tpu.memory_space<vmem>>, vector<128x128xf32>
    %c0_11 = arith.constant 0 : index
    %c0_12 = arith.constant 0 : index
    %c0_13 = arith.constant 0 : index
    %6 = vector.load %arg1[%c0_11, %c0_12, %c0_13] : memref<1x4x256xf32, #tpu.memory_space<vmem>>, vector<1x4x256xf32>
    %7 = vector.shape_cast %6 : vector<1x4x256xf32> to vector<4x256xf32>
    %8 = arith.truncf %7 : vector<4x256xf32> to vector<4x256xbf16>
    %cst = arith.constant dense<0.000000e+00> : vector<128x256xf32>
    %9 = tpu.matmul %0, %8, %cst {dimension_numbers = #tpu.dot_dimension_numbers<[1], [0], [0], [1], [0, 0, 1, 1], [], []>} : vector<128x4xbf16>, vector<4x256xbf16>, vector<128x256xf32> -> vector<128x256xf32>
    %cst_14 = arith.constant dense<0xFF800000> : vector<128xf32>
    %10 = vector.multi_reduction <maximumf>, %9, %cst_14 [1] : vector<128x256xf32> to vector<128xf32>
    %11 = vector.shape_cast %10 : vector<128xf32> to vector<128x1xf32>
    %12 = vector.broadcast %11 : vector<128x1xf32> to vector<128x256xf32>
    %13 = arith.subf %9, %12 : vector<128x256xf32>
    %14 = math.exp %13 : vector<128x256xf32>
    %cst_15 = arith.constant dense<0.000000e+00> : vector<128xf32>
    %15 = vector.multi_reduction <add>, %14, %cst_15 [1] : vector<128x256xf32> to vector<128xf32>
    %16 = vector.shape_cast %15 : vector<128xf32> to vector<128x1xf32>
    %17 = tpu.reciprocal %16 {approx = true} : vector<128x1xf32> -> vector<128x1xf32>
    %18 = vector.broadcast %17 : vector<128x1xf32> to vector<128x256xf32>
    %19 = arith.mulf %14, %18 : vector<128x256xf32>
    %20 = arith.truncf %19 : vector<128x256xf32> to vector<128x256xbf16>
    %cst_16 = arith.constant dense<0.000000e+00> : vector<128x256xf32>
    %21 = tpu.matmul %1, %8, %cst_16 {dimension_numbers = #tpu.dot_dimension_numbers<[1], [0], [0], [1], [0, 0, 1, 1], [], []>} : vector<128x4xbf16>, vector<4x256xbf16>, vector<128x256xf32> -> vector<128x256xf32>
    %22 = arith.truncf %21 : vector<128x256xf32> to vector<128x256xbf16>
    %cst_17 = arith.constant dense<0.000000e+00> : vector<128x128xf32>
    %23 = tpu.matmul %22, %20, %cst_17 {dimension_numbers = #tpu.dot_dimension_numbers<[1], [1], [0], [0], [0, 0, 1, 0], [], []>} : vector<128x256xbf16>, vector<128x256xbf16>, vector<128x128xf32> -> vector<128x128xf32>
    %24 = arith.mulf %23, %5 : vector<128x128xf32>
    %25 = arith.truncf %24 : vector<128x128xf32> to vector<128x128xbf16>
    %cst_18 = arith.constant dense<0.000000e+00> : vector<4x128xf32>
    %26 = tpu.matmul %3, %25, %cst_18 {dimension_numbers = #tpu.dot_dimension_numbers<[1], [0], [0], [1], [0, 0, 1, 1], [], []>} : vector<4x128xbf16>, vector<128x128xbf16>, vector<4x128xf32> -> vector<4x128xf32>
    %27 = arith.truncf %26 : vector<4x128xf32> to vector<4x128xbf16>
    %cst_19 = arith.constant dense<0.000000e+00> : vector<4x4xf32>
    %28 = tpu.matmul %27, %2, %cst_19 {dimension_numbers = #tpu.dot_dimension_numbers<[1], [0], [0], [1], [0, 0, 1, 1], [], []>} : vector<4x128xbf16>, vector<128x4xbf16>, vector<4x4xf32> -> vector<4x4xf32>
    %29 = vector.extract_strided_slice %28 {offsets = [0, 0], sizes = [4, 1], strides = [1, 1]} : vector<4x4xf32> to vector<4x1xf32>
    %30 = vector.extract_strided_slice %7 {offsets = [0, 0], sizes = [1, 256], strides = [1, 1]} : vector<4x256xf32> to vector<1x256xf32>
    %31 = vector.broadcast %29 : vector<4x1xf32> to vector<4x256xf32>
    %32 = vector.broadcast %30 : vector<1x256xf32> to vector<4x256xf32>
    %33 = arith.mulf %31, %32 : vector<4x256xf32>
    %34 = vector.extract_strided_slice %28 {offsets = [0, 1], sizes = [4, 1], strides = [1, 1]} : vector<4x4xf32> to vector<4x1xf32>
    %35 = vector.extract_strided_slice %7 {offsets = [1, 0], sizes = [1, 256], strides = [1, 1]} : vector<4x256xf32> to vector<1x256xf32>
    %36 = vector.broadcast %34 : vector<4x1xf32> to vector<4x256xf32>
    %37 = vector.broadcast %35 : vector<1x256xf32> to vector<4x256xf32>
    %38 = arith.mulf %36, %37 : vector<4x256xf32>
    %39 = arith.addf %33, %38 : vector<4x256xf32>
    %40 = vector.extract_strided_slice %28 {offsets = [0, 2], sizes = [4, 1], strides = [1, 1]} : vector<4x4xf32> to vector<4x1xf32>
    %41 = vector.extract_strided_slice %7 {offsets = [2, 0], sizes = [1, 256], strides = [1, 1]} : vector<4x256xf32> to vector<1x256xf32>
    %42 = vector.broadcast %40 : vector<4x1xf32> to vector<4x256xf32>
    %43 = vector.broadcast %41 : vector<1x256xf32> to vector<4x256xf32>
    %44 = arith.mulf %42, %43 : vector<4x256xf32>
    %45 = arith.addf %39, %44 : vector<4x256xf32>
    %46 = vector.extract_strided_slice %28 {offsets = [0, 3], sizes = [4, 1], strides = [1, 1]} : vector<4x4xf32> to vector<4x1xf32>
    %47 = vector.extract_strided_slice %7 {offsets = [3, 0], sizes = [1, 256], strides = [1, 1]} : vector<4x256xf32> to vector<1x256xf32>
    %48 = vector.broadcast %46 : vector<4x1xf32> to vector<4x256xf32>
    %49 = vector.broadcast %47 : vector<1x256xf32> to vector<4x256xf32>
    %50 = arith.mulf %48, %49 : vector<4x256xf32>
    %51 = arith.addf %45, %50 : vector<4x256xf32>
    %52 = vector.broadcast %4 : vector<4x1xf32> to vector<4x256xf32>
    %53 = arith.addf %51, %52 : vector<4x256xf32>
    %c0_20 = arith.constant 0 : index
    %c0_21 = arith.constant 0 : index
    %c0_22 = arith.constant 0 : index
    %54 = vector.load %arg8[%c0_20, %c0_21, %c0_22] : memref<1x4x256xf32, #tpu.memory_space<vmem>>, vector<1x4x256xf32>
    %55 = vector.shape_cast %54 : vector<1x4x256xf32> to vector<4x256xf32>
    %56 = vector.shape_cast %53 : vector<4x256xf32> to vector<1x4x256xf32>
    tpu.vector_store %arg8[%c0_20, %c0_21, %c0_22], %56 {strides = array<i32>} : memref<1x4x256xf32, #tpu.memory_space<vmem>>, vector<1x4x256xf32>,
    return
  }
  func.func @transform_0(%arg0: i32) -> (i32, i32, i32) {
    %c0_i32 = arith.constant 0 : i32
    %c0_i32_0 = arith.constant 0 : i32
    %c0_i32_1 = arith.constant 0 : i32
    return %arg0, %c0_i32, %c0_i32_0 : i32, i32, i32
  }
  func.func @transform_1(%arg0: i32) -> (i32, i32) {
    %c0_i32 = arith.constant 0 : i32
    %c0_i32_0 = arith.constant 0 : i32
    %c0_i32_1 = arith.constant 0 : i32
    return %c0_i32, %c0_i32_0 : i32, i32
  }
  func.func @transform_2(%arg0: i32) -> (i32, i32) {
    %c0_i32 = arith.constant 0 : i32
    %c0_i32_0 = arith.constant 0 : i32
    %c0_i32_1 = arith.constant 0 : i32
    return %c0_i32, %c0_i32_0 : i32, i32
  }
  func.func @transform_3(%arg0: i32) -> (i32, i32) {
    %c0_i32 = arith.constant 0 : i32
    %c0_i32_0 = arith.constant 0 : i32
    %c0_i32_1 = arith.constant 0 : i32
    return %c0_i32, %c0_i32_0 : i32, i32
  }
  func.func @transform_4(%arg0: i32) -> (i32, i32) {
    %c0_i32 = arith.constant 0 : i32
    %c0_i32_0 = arith.constant 0 : i32
    %c0_i32_1 = arith.constant 0 : i32
    return %c0_i32, %c0_i32_0 : i32, i32
  }
  func.func @transform_5(%arg0: i32) -> (i32, i32) {
    %c0_i32 = arith.constant 0 : i32
    %c0_i32_0 = arith.constant 0 : i32
    %c0_i32_1 = arith.constant 0 : i32
    return %c0_i32, %c0_i32_0 : i32, i32
  }
  func.func @transform_6(%arg0: i32) -> (i32, i32) {
    %c0_i32 = arith.constant 0 : i32
    %c0_i32_0 = arith.constant 0 : i32
    %c0_i32_1 = arith.constant 0 : i32
    return %c0_i32, %c0_i32_0 : i32, i32
  }
  func.func @transform_7(%arg0: i32) -> (i32, i32, i32) {
    %c0_i32 = arith.constant 0 : i32
    %c0_i32_0 = arith.constant 0 : i32
    %c0_i32_1 = arith.constant 0 : i32
    return %arg0, %c0_i32, %c0_i32_0 : i32, i32, i32
  }
}

</mosaic_0001>

<llo_original>
// kernel: tpu_custom_call.1
$region0: #{tpu_custom_call.1}
  #allocation0 [shape = 'u32[]', space=smem, size = 0x4, offset = 0x4, fixed_abs, tag = 'smem constant byte address 0x4 - core index']
  #allocation1 [shape = 'u32[144,128]{1,0:T(1,128)}', space=vmem, size = 0x12000, scoped, tag = 'internal scratch']
  %s0 = inlined_call_operand.vmem [shape: f32[2,4,256], index: 0, kind: input, shape index: {}]
  %s1 = inlined_call_operand.vmem [shape: bf16[128,4], index: 1, kind: input, shape index: {}]
  %s2 = inlined_call_operand.vmem [shape: bf16[128,4], index: 2, kind: input, shape index: {}]
  %s3 = inlined_call_operand.vmem [shape: bf16[128,4], index: 3, kind: input, shape index: {}]
  %s4 = inlined_call_operand.vmem [shape: bf16[4,128], index: 4, kind: input, shape index: {}]
  %s5 = inlined_call_operand.vmem [shape: f32[4,1], index: 5, kind: input, shape index: {}]
  %s6 = inlined_call_operand.vmem [shape: f32[128,128], index: 6, kind: input, shape index: {}]
  %s7 = inlined_call_operand.hbm [shape: f32[2,4,256], index: 7, kind: output, shape index: {}]
  %s8 = sld [smem:[#allocation0]]
  $region61: #{tpu_custom_call.1} parent=0
    _
  %s10 = ssub.s32 1, %s8
  %s11 = scalar_select 0, %s10, %s8
  $region1: #{tpu_custom_call.1} parent=0
    #allocation2 [shape = 'u8[8192]{0}', space=vmem, size = 0x2000, scoped, tag = 'output window, operand 0']
    #allocation3 [shape = 's32[2]{0}', space=sflag, size = 0x8, scoped, tag = 'scoped memory for tpu_custom_call.1']
    %12 = vsyncpa [#allocation3], 0
    %s13 = scalar_lea.sflag [#allocation3], 1
    %14 = vsyncpa %s13, 0
    loop: start=0, step=1, limit=4
    $region2: #{tpu_custom_call.1} parent=1 // loop_pre_header
      _
    $region3: #{tpu_custom_call.1} parent=1 // loop_header
      %s16 = sphi 0, %s20
      %p17 = scmp.ge.s32.totalorder %s16, 4
      %s26 = sphi 0, %s28
      %s29 = sphi 0, %s26
      %s30 = sphi 0, %s29
      %s46 = sphi 0, %s30
      %s50 = sphi 0, %s50
      %s52 = sphi 0, %s50
      %s53 = sphi 0, %s52
      %s67 = sphi 0, %s53
      %s71 = sphi 0, %s71
      %s73 = sphi 0, %s71
      %s74 = sphi 0, %s73
      %s88 = sphi 0, %s74
      %s92 = sphi 0, %s92
      %s94 = sphi 0, %s92
      %s95 = sphi 0, %s94
      %s109 = sphi 0, %s95
      %s113 = sphi 0, %s113
      %s115 = sphi 0, %s113
      %s116 = sphi 0, %s115
      %s130 = sphi 0, %s116
      %s134 = sphi 0, %s134
      %s136 = sphi 0, %s134
      %s137 = sphi 0, %s136
      %s151 = sphi 0, %s137
      %s155 = sphi 0, %s155
      %s157 = sphi 0, %s155
      %s158 = sphi 0, %s157
      %s172 = sphi 0, %s158
      %s178 = sphi 0, %s180
      %s181 = sphi 0, %s178
      %s182 = sphi 0, %s181
      %s198 = sphi 0, %s182
    $region4: #{tpu_custom_call.1} parent=1 // loop_header_branch
      %19 = sbr.rel (%p17) target = $region8
    $region5: #{tpu_custom_call.1} parent=1 // loop_body
      %s21 = ssub.s32 %s16, 1
      %s22 = ssub.s32 %s16, 2
      %s23 = sadd.s32 %s16, 1
      %s24 = ssub.s32 %s16, %s23
      %p25 = scmp.eq.s32.totalorder %s24, 0
      %s27 = sadd.s32 %s26, 1
      %s28 = scalar_select %p25, %s26, %s27
      %p31 = pneg %p25
      %p32 = scmp.eq.s32.totalorder %s16, 1
      %p33 = por %p31, %p32
      %p34 = scmp.ne.s32.totalorder %s26, %s29
      %p35 = scmp.eq.s32.totalorder %s16, 0
      %p36 = por %p34, %p35
      %p37 = scmp.ne.s32.totalorder %s26, %s29
      %p38 = scmp.eq.s32.totalorder %s21, 1
      %p39 = por %p37, %p38
      %p40 = scmp.ne.s32.totalorder %s29, %s30
      %p41 = scmp.eq.s32.totalorder %s21, 0
      %p42 = por %p40, %p41
      %p43 = scmp.ne.s32.totalorder %s29, %s30
      %p44 = scmp.eq.s32.totalorder %s22, 1
      %p45 = por %p43, %p44
      %p47 = scmp.ne.s32.totalorder %s30, %s46
      %p48 = scmp.eq.s32.totalorder %s22, 0
      %p49 = por %p47, %p48
      %s51 = sadd.s32 %s50, 1
      %p54 = scmp.eq.s32.totalorder %s16, 1
      %p55 = scmp.ne.s32.totalorder %s50, %s52
      %p56 = scmp.eq.s32.totalorder %s16, 0
      %p57 = por %p55, %p56
      %p58 = scmp.ne.s32.totalorder %s50, %s52
      %p59 = scmp.eq.s32.totalorder %s21, 1
      %p60 = por %p58, %p59
      %p61 = scmp.ne.s32.totalorder %s52, %s53
      %p62 = scmp.eq.s32.totalorder %s21, 0
      %p63 = por %p61, %p62
      %p64 = scmp.ne.s32.totalorder %s52, %s53
      %p65 = scmp.eq.s32.totalorder %s22, 1
      %p66 = por %p64, %p65
      %p68 = scmp.ne.s32.totalorder %s53, %s67
      %p69 = scmp.eq.s32.totalorder %s22, 0
      %p70 = por %p68, %p69
      %s72 = sadd.s32 %s71, 1
      %p75 = scmp.eq.s32.totalorder %s16, 1
      %p76 = scmp.ne.s32.totalorder %s71, %s73
      %p77 = scmp.eq.s32.totalorder %s16, 0
      %p78 = por %p76, %p77
      %p79 = scmp.ne.s32.totalorder %s71, %s73
      %p80 = scmp.eq.s32.totalorder %s21, 1
      %p81 = por %p79, %p80
      %p82 = scmp.ne.s32.totalorder %s73, %s74
      %p83 = scmp.eq.s32.totalorder %s21, 0
      %p84 = por %p82, %p83
      %p85 = scmp.ne.s32.totalorder %s73, %s74
      %p86 = scmp.eq.s32.totalorder %s22, 1
      %p87 = por %p85, %p86
      %p89 = scmp.ne.s32.totalorder %s74, %s88
      %p90 = scmp.eq.s32.totalorder %s22, 0
      %p91 = por %p89, %p90
      %s93 = sadd.s32 %s92, 1
      %p96 = scmp.eq.s32.totalorder %s16, 1
      %p97 = scmp.ne.s32.totalorder %s92, %s94
      %p98 = scmp.eq.s32.totalorder %s16, 0
      %p99 = por %p97, %p98
      %p100 = scmp.ne.s32.totalorder %s92, %s94
      %p101 = scmp.eq.s32.totalorder %s21, 1
      %p102 = por %p100, %p101
      %p103 = scmp.ne.s32.totalorder %s94, %s95
      %p104 = scmp.eq.s32.totalorder %s21, 0
      %p105 = por %p103, %p104
      %p106 = scmp.ne.s32.totalorder %s94, %s95
      %p107 = scmp.eq.s32.totalorder %s22, 1
      %p108 = por %p106, %p107
      %p110 = scmp.ne.s32.totalorder %s95, %s109
      %p111 = scmp.eq.s32.totalorder %s22, 0
      %p112 = por %p110, %p111
      %s114 = sadd.s32 %s113, 1
      %p117 = scmp.eq.s32.totalorder %s16, 1
      %p118 = scmp.ne.s32.totalorder %s113, %s115
      %p119 = scmp.eq.s32.totalorder %s16, 0
      %p120 = por %p118, %p119
      %p121 = scmp.ne.s32.totalorder %s113, %s115
      %p122 = scmp.eq.s32.totalorder %s21, 1
      %p123 = por %p121, %p122
      %p124 = scmp.ne.s32.totalorder %s115, %s116
      %p125 = scmp.eq.s32.totalorder %s21, 0
      %p126 = por %p124, %p125
      %p127 = scmp.ne.s32.totalorder %s115, %s116
      %p128 = scmp.eq.s32.totalorder %s22, 1
      %p129 = por %p127, %p128
      %p131 = scmp.ne.s32.totalorder %s116, %s130
      %p132 = scmp.eq.s32.totalorder %s22, 0
      %p133 = por %p131, %p132
      %s135 = sadd.s32 %s134, 1
      %p138 = scmp.eq.s32.totalorder %s16, 1
      %p139 = scmp.ne.s32.totalorder %s134, %s136
      %p140 = scmp.eq.s32.totalorder %s16, 0
      %p141 = por %p139, %p140
      %p142 = scmp.ne.s32.totalorder %s134, %s136
      %p143 = scmp.eq.s32.totalorder %s21, 1
      %p144 = por %p142, %p143
      %p145 = scmp.ne.s32.totalorder %s136, %s137
      %p146 = scmp.eq.s32.totalorder %s21, 0
      %p147 = por %p145, %p146
      %p148 = scmp.ne.s32.totalorder %s136, %s137
      %p149 = scmp.eq.s32.totalorder %s22, 1
      %p150 = por %p148, %p149
      %p152 = scmp.ne.s32.totalorder %s137, %s151
      %p153 = scmp.eq.s32.totalorder %s22, 0
      %p154 = por %p152, %p153
      %s156 = sadd.s32 %s155, 1
      %p159 = scmp.eq.s32.totalorder %s16, 1
      %p160 = scmp.ne.s32.totalorder %s155, %s157
      %p161 = scmp.eq.s32.totalorder %s16, 0
      %p162 = por %p160, %p161
      %p163 = scmp.ne.s32.totalorder %s155, %s157
      %p164 = scmp.eq.s32.totalorder %s21, 1
      %p165 = por %p163, %p164
      %p166 = scmp.ne.s32.totalorder %s157, %s158
      %p167 = scmp.eq.s32.totalorder %s21, 0
      %p168 = por %p166, %p167
      %p169 = scmp.ne.s32.totalorder %s157, %s158
      %p170 = scmp.eq.s32.totalorder %s22, 1
      %p171 = por %p169, %p170
      %p173 = scmp.ne.s32.totalorder %s158, %s172
      %p174 = scmp.eq.s32.totalorder %s22, 0
      %p175 = por %p173, %p174
      %s176 = ssub.s32 %s16, %s23
      %p177 = scmp.eq.s32.totalorder %s176, 0
      %s179 = sadd.s32 %s178, 1
      %s180 = scalar_select %p177, %s178, %s179
      %p183 = pneg %p177
      %p184 = scmp.eq.s32.totalorder %s16, 1
      %p185 = por %p183, %p184
      %p186 = scmp.ne.s32.totalorder %s178, %s181
      %p187 = scmp.eq.s32.totalorder %s16, 0
      %p188 = por %p186, %p187
      %p189 = scmp.ne.s32.totalorder %s178, %s181
      %p190 = scmp.eq.s32.totalorder %s21, 1
      %p191 = por %p189, %p190
      %p192 = scmp.ne.s32.totalorder %s181, %s182
      %p193 = scmp.eq.s32.totalorder %s21, 0
      %p194 = por %p192, %p193
      %p195 = scmp.ne.s32.totalorder %s181, %s182
      %p196 = scmp.eq.s32.totalorder %s22, 1
      %p197 = por %p195, %p196
      %p199 = scmp.ne.s32.totalorder %s182, %s198
      %p200 = scmp.eq.s32.totalorder %s22, 0
      %p201 = por %p199, %p200
      %p202 = scmp.le.s32.totalorder 1, %s16
      %p203 = scmp.lt.s32.totalorder %s16, 3
      %p204 = pnand %p202, %p203
      %p205 = pneg %p204
      // Predicated region
      $region9: #{tpu_custom_call.1} parent=5 // pred_check
        _
      $region10: #{tpu_custom_call.1} parent=5 // pred_check_branch
        %207 = sbr.rel (%p204) target = $region12
      $region11: #{tpu_custom_call.1} parent=5 // pred_region
        %s208 = ssub.s32 %s16, 1
        // Predicated region
        $region13: #{tpu_custom_call.1} parent=11 // pred_check
          %p209 = pneg %p63
        $region14: #{tpu_custom_call.1} parent=11 // pred_check_branch
          %211 = sbr.rel (%p209) target = $region16
        $region15: #{tpu_custom_call.1} parent=11 // pred_region
          _
        $region16: #{tpu_custom_call.1} parent=11 // pred_fallthru
          _
        // Predicated region
        $region17: #{tpu_custom_call.1} parent=11 // pred_check
          %p212 = pneg %p84
        $region18: #{tpu_custom_call.1} parent=11 // pred_check_branch
          %214 = sbr.rel (%p212) target = $region20
        $region19: #{tpu_custom_call.1} parent=11 // pred_region
          _
        $region20: #{tpu_custom_call.1} parent=11 // pred_fallthru
          _
        // Predicated region
        $region21: #{tpu_custom_call.1} parent=11 // pred_check
          %p215 = pneg %p105
        $region22: #{tpu_custom_call.1} parent=11 // pred_check_branch
          %217 = sbr.rel (%p215) target = $region24
        $region23: #{tpu_custom_call.1} parent=11 // pred_region
          _
        $region24: #{tpu_custom_call.1} parent=11 // pred_fallthru
          _
        // Predicated region
        $region25: #{tpu_custom_call.1} parent=11 // pred_check
          %p218 = pneg %p126
        $region26: #{tpu_custom_call.1} parent=11 // pred_check_branch
          %220 = sbr.rel (%p218) target = $region28
        $region27: #{tpu_custom_call.1} parent=11 // pred_region
          _
        $region28: #{tpu_custom_call.1} parent=11 // pred_fallthru
          _
        // Predicated region
        $region29: #{tpu_custom_call.1} parent=11 // pred_check
          %p221 = pneg %p147
        $region30: #{tpu_custom_call.1} parent=11 // pred_check_branch
          %223 = sbr.rel (%p221) target = $region32
        $region31: #{tpu_custom_call.1} parent=11 // pred_region
          _
        $region32: #{tpu_custom_call.1} parent=11 // pred_fallthru
          _
        // Predicated region
        $region33: #{tpu_custom_call.1} parent=11 // pred_check
          %p224 = pneg %p168
        $region34: #{tpu_custom_call.1} parent=11 // pred_check_branch
          %226 = sbr.rel (%p224) target = $region36
        $region35: #{tpu_custom_call.1} parent=11 // pred_region
          _
        $region36: #{tpu_custom_call.1} parent=11 // pred_fallthru
          _
      $region12: #{tpu_custom_call.1} parent=5 // pred_fallthru
        _
      %p227 = scmp.lt.s32.totalorder %s16, 2
      // Predicated region
      $region37: #{tpu_custom_call.1} parent=5 // pred_check
        %p228 = pneg %p227
      $region38: #{tpu_custom_call.1} parent=5 // pred_check_branch
        %230 = sbr.rel (%p228) target = $region40
      $region39: #{tpu_custom_call.1} parent=5 // pred_region
        // Predicated region
        $region41: #{tpu_custom_call.1} parent=39 // pred_check
          %p231 = pneg %p36
        $region42: #{tpu_custom_call.1} parent=39 // pred_check_branch
          %233 = sbr.rel (%p231) target = $region44
        $region43: #{tpu_custom_call.1} parent=39 // pred_region
          %p234 = scmp.lt.s32.totalorder %s16, 1
          %s235 = scalar_select %p234, %s16, 1
          %s236 = smul.addr %s235, 2
          %s237 = smul.addr %s236, 4
          %s238 = scalar_lea.vmem %s0, %s237
        $region44: #{tpu_custom_call.1} parent=39 // pred_fallthru
          _
      $region40: #{tpu_custom_call.1} parent=5 // pred_fallthru
        _
      %p239 = scmp.le.s32.totalorder 1, %s16
      %p240 = scmp.lt.s32.totalorder %s16, 3
      %p241 = pnand %p239, %p240
      %p242 = pneg %p241
      // Predicated region
      $region45: #{tpu_custom_call.1} parent=5 // pred_check
        _
      $region46: #{tpu_custom_call.1} parent=5 // pred_check_branch
        %244 = sbr.rel (%p241) target = $region48
      $region47: #{tpu_custom_call.1} parent=5 // pred_region
        %s245 = ssub.s32 %s16, 1
        %p246 = scmp.lt.s32.totalorder %s21, 1
        %s247 = scalar_select %p246, %s21, 1
        %s248 = smul.addr %s247, 2
        %s249 = smul.addr %s248, 4
        %s250 = scalar_lea.vmem %s0, %s249
        %p251 = pneg %p42
        %p252 = pneg %p39
        %p253 = pneg %p63
        %p254 = pneg %p60
        %p255 = pneg %p84
        %p256 = pneg %p81
        %p257 = pneg %p105
        %p258 = pneg %p102
        %p259 = pneg %p126
        %p260 = pneg %p123
        %p261 = pneg %p147
        %p262 = pneg %p144
        %p263 = pneg %p168
        %p264 = pneg %p165
        %p265 = pneg %p194
        %p266 = pneg %p191
        %s267 = sand.u32 %s181, 1
        %s268 = scalar_lea.sflag [#allocation3], %s267
        %s269 = sand.u32 %s181, 1
        %s270 = smul.addr %s269, 8
        %s271 = scalar_lea.vmem [#allocation2], %s270
        %p272 = scmp.lt.s32.totalorder %s21, 1
        %s273 = scalar_select %p272, %s21, 1
        %s274 = smul.addr %s273, 2
        %s275 = smul.addr %s274, 4
        %s276 = scalar_lea.vmem %s0, %s275
        %v278 = vld [vmem:[%s1] sm:$0xf]
        %v279 = vld [vmem:[%s1 + $0x4] sm:$0xf]
        %v280 = vld [vmem:[%s1 + $0x8] sm:$0xf]
        %v281 = vld [vmem:[%s1 + $0xc] sm:$0xf]
        %v282 = vld [vmem:[%s1 + $0x10] sm:$0xf]
        %v283 = vld [vmem:[%s1 + $0x14] sm:$0xf]
        %v284 = vld [vmem:[%s1 + $0x18] sm:$0xf]
        %v285 = vld [vmem:[%s1 + $0x1c] sm:$0xf]
        %v286 = vld [vmem:[%s1 + $0x20] sm:$0xf]
        %v287 = vld [vmem:[%s1 + $0x24] sm:$0xf]
        %v288 = vld [vmem:[%s1 + $0x28] sm:$0xf]
        %v289 = vld [vmem:[%s1 + $0x2c] sm:$0xf]
        %v290 = vld [vmem:[%s1 + $0x30] sm:$0xf]
        %v291 = vld [vmem:[%s1 + $0x34] sm:$0xf]
        %v292 = vld [vmem:[%s1 + $0x38] sm:$0xf]
        %v293 = vld [vmem:[%s1 + $0x3c] sm:$0xf]
        %v294 = vld [vmem:[%s2] sm:$0xf]
        %v295 = vld [vmem:[%s2 + $0x4] sm:$0xf]
        %v296 = vld [vmem:[%s2 + $0x8] sm:$0xf]
        %v297 = vld [vmem:[%s2 + $0xc] sm:$0xf]
        %v298 = vld [vmem:[%s2 + $0x10] sm:$0xf]
        %v299 = vld [vmem:[%s2 + $0x14] sm:$0xf]
        %v300 = vld [vmem:[%s2 + $0x18] sm:$0xf]
        %v301 = vld [vmem:[%s2 + $0x1c] sm:$0xf]
        %v302 = vld [vmem:[%s2 + $0x20] sm:$0xf]
        %v303 = vld [vmem:[%s2 + $0x24] sm:$0xf]
        %v304 = vld [vmem:[%s2 + $0x28] sm:$0xf]
        %v305 = vld [vmem:[%s2 + $0x2c] sm:$0xf]
        %v306 = vld [vmem:[%s2 + $0x30] sm:$0xf]
        %v307 = vld [vmem:[%s2 + $0x34] sm:$0xf]
        %v308 = vld [vmem:[%s2 + $0x38] sm:$0xf]
        %v309 = vld [vmem:[%s2 + $0x3c] sm:$0xf]
        %v310 = vld [vmem:[%s3] sm:$0xf]
        %v311 = vld [vmem:[%s3 + $0x4] sm:$0xf]
        %v312 = vld [vmem:[%s3 + $0x8] sm:$0xf]
        %v313 = vld [vmem:[%s3 + $0xc] sm:$0xf]
        %v314 = vld [vmem:[%s3 + $0x10] sm:$0xf]
        %v315 = vld [vmem:[%s3 + $0x14] sm:$0xf]
        %v316 = vld [vmem:[%s3 + $0x18] sm:$0xf]
        %v317 = vld [vmem:[%s3 + $0x1c] sm:$0xf]
        %v318 = vld [vmem:[%s3 + $0x20] sm:$0xf]
        %v319 = vld [vmem:[%s3 + $0x24] sm:$0xf]
        %v320 = vld [vmem:[%s3 + $0x28] sm:$0xf]
        %v321 = vld [vmem:[%s3 + $0x2c] sm:$0xf]
        %v322 = vld [vmem:[%s3 + $0x30] sm:$0xf]
        %v323 = vld [vmem:[%s3 + $0x34] sm:$0xf]
        %v324 = vld [vmem:[%s3 + $0x38] sm:$0xf]
        %v325 = vld [vmem:[%s3 + $0x3c] sm:$0xf]
        %v326 = vld [vmem:[%s4] sm:$0x3]
        %v327 = vld [vmem:[%s5] sm:$0xf]
        %v328 = vld [vmem:[%s6] sm:$0xff]
        %v329 = vld [vmem:[%s6 + $0x8] sm:$0xff]
        %v330 = vld [vmem:[%s6 + $0x10] sm:$0xff]
        %v331 = vld [vmem:[%s6 + $0x18] sm:$0xff]
        %v332 = vld [vmem:[%s6 + $0x20] sm:$0xff]
        %v333 = vld [vmem:[%s6 + $0x28] sm:$0xff]
        %v334 = vld [vmem:[%s6 + $0x30] sm:$0xff]
        %v335 = vld [vmem:[%s6 + $0x38] sm:$0xff]
        %v336 = vld [vmem:[%s6 + $0x40] sm:$0xff]
        %v337 = vld [vmem:[%s6 + $0x48] sm:$0xff]
        %v338 = vld [vmem:[%s6 + $0x50] sm:$0xff]
        %v339 = vld [vmem:[%s6 + $0x58] sm:$0xff]
        %v340 = vld [vmem:[%s6 + $0x60] sm:$0xff]
        %v341 = vld [vmem:[%s6 + $0x68] sm:$0xff]
        %v342 = vld [vmem:[%s6 + $0x70] sm:$0xff]
        %v343 = vld [vmem:[%s6 + $0x78] sm:$0xff]
        %v344 = vld [vmem:[%s276] sm:$0xff]
        %v346 = vcombine.high %v344, %v344
        %v348 = vpack.c.bf16 %v344, %v344
        %v349 = vpack.c.bf16 %v346, %v346
        %v366 = vunpack.c.l.b16 %v278
        %v367 = vunpack.c.l.b16 %v279
        %v368 = vunpack.c.l.b16 %v280
        %v369 = vunpack.c.l.b16 %v281
        %v370 = vunpack.c.l.b16 %v282
        %v371 = vunpack.c.l.b16 %v283
        %v372 = vunpack.c.l.b16 %v284
        %v373 = vunpack.c.l.b16 %v285
        %v374 = vunpack.c.l.b16 %v286
        %v375 = vunpack.c.l.b16 %v287
        %v376 = vunpack.c.l.b16 %v288
        %v377 = vunpack.c.l.b16 %v289
        %v378 = vunpack.c.l.b16 %v290
        %v379 = vunpack.c.l.b16 %v291
        %v380 = vunpack.c.l.b16 %v292
        %v381 = vunpack.c.l.b16 %v293
        %v382 = vpack.c.b16 %v367, %v366
        %v383 = vpack.c.b16 %v369, %v368
        %v384 = vpack.c.b16 %v371, %v370
        %v385 = vpack.c.b16 %v373, %v372
        %v386 = vpack.c.b16 %v375, %v374
        %v387 = vpack.c.b16 %v377, %v376
        %v388 = vpack.c.b16 %v379, %v378
        %v389 = vpack.c.b16 %v381, %v380
        %vm390 = vcmask 31744
        %v392 = vsel %vm390, %v382, 0
        %v395 = vsel %vm390, %v383, 0
        %v398 = vsel %vm390, %v384, 0
        %v401 = vsel %vm390, %v385, 0
        %v404 = vsel %vm390, %v386, 0
        %v407 = vsel %vm390, %v387, 0
        %v410 = vsel %vm390, %v388, 0
        %v413 = vsel %vm390, %v389, 0
        %vm415 = vcmask 1041408
        %v417 = vsel %vm415, %v348, 0
        %v420 = vsel %vm415, %v349, 0
        %422 = vmatprep.subr.bf16.mxu0 0
        %423 = vmatpush1.bf16.msra.mxu0 0
        %424 = vmatprep.subr.bf16.mxu0 0
        %425 = vmatpush1.bf16.msra.mxu0 0
        %426 = vmatprep.subr.bf16.mxu0 0
        %427 = vmatpush1.bf16.msra.mxu0 0
        %428 = vmatprep.subr.bf16.mxu0 0
        %429 = vmatpush1.bf16.msra.mxu0 0
        %430 = vmatprep.subr.bf16.mxu0 0
        %431 = vmatpush1.bf16.msra.mxu0 0
        %432 = vmatprep.subr.bf16.mxu0 0
        %433 = vmatpush1.bf16.msra.mxu0 0
        %434 = vmatprep.subr.bf16.mxu0 0
        %435 = vmatpush1.bf16.msra.mxu0 0
        %436 = vmatprep.subr.bf16.mxu0 %v420
        %437 = vmatpush1.bf16.msra.mxu0 %v417
        %438 = vmatprep.subr.bf16.mxu0 0
        %439 = vmatpush2.bf16.msra.mxu0 0
        %440 = vmatprep.subr.bf16.mxu0 0
        %441 = vmatpush2.bf16.msra.mxu0 0
        %442 = vmatprep.subr.bf16.mxu0 0
        %443 = vmatpush2.bf16.msra.mxu0 0
        %444 = vmatprep.subr.bf16.mxu0 0
        %445 = vmatpush2.bf16.msra.mxu0 0
        %446 = vmatprep.subr.bf16.mxu0 0
        %447 = vmatpush2.bf16.msra.mxu0 0
        %448 = vmatprep.subr.bf16.mxu0 0
        %449 = vmatpush2.bf16.msra.mxu0 0
        %450 = vmatprep.subr.bf16.mxu0 0
        %451 = vmatpush2.bf16.msra.mxu0 0
        %452 = vmatprep.subr.bf16.mxu0 0
        %453 = vmatpush2.bf16.msra.mxu0 0
        %454 = vmatprep.mubr.bf16.mxu0 0
        %455 = vmatmul.mubr.bf16.gmra.mxu0 %v392
        %v456 = vpop.f32.mrf.mxu0
        %v457 = vadd.f32 0.0, %v456
        %v458 = vpop.f32.mrf.mxu0
        %v459 = vadd.f32 0.0, %v458
        %v460 = vpop.f32.mrf.mxu0
        %v461 = vadd.f32 0.0, %v460
        %v462 = vpop.f32.mrf.mxu0
        %v463 = vadd.f32 0.0, %v462
        %464 = vmatprep.mubr.bf16.mxu0 0
        %465 = vmatmul.mubr.bf16.gmra.mxu0 %v395
        %v466 = vpop.f32.mrf.mxu0
        %v467 = vadd.f32 0.0, %v466
        %v468 = vpop.f32.mrf.mxu0
        %v469 = vadd.f32 0.0, %v468
        %v470 = vpop.f32.mrf.mxu0
        %v471 = vadd.f32 0.0, %v470
        %v472 = vpop.f32.mrf.mxu0
        %v473 = vadd.f32 0.0, %v472
        %474 = vmatprep.mubr.bf16.mxu0 0
        %475 = vmatmul.mubr.bf16.gmra.mxu0 %v398
        %v476 = vpop.f32.mrf.mxu0
        %v477 = vadd.f32 0.0, %v476
        %v478 = vpop.f32.mrf.mxu0
        %v479 = vadd.f32 0.0, %v478
        %v480 = vpop.f32.mrf.mxu0
        %v481 = vadd.f32 0.0, %v480
        %v482 = vpop.f32.mrf.mxu0
        %v483 = vadd.f32 0.0, %v482
        %484 = vmatprep.mubr.bf16.mxu0 0
        %485 = vmatmul.mubr.bf16.gmra.mxu0 %v401
        %v486 = vpop.f32.mrf.mxu0
        %v487 = vadd.f32 0.0, %v486
        %v488 = vpop.f32.mrf.mxu0
        %v489 = vadd.f32 0.0, %v488
        %v490 = vpop.f32.mrf.mxu0
        %v491 = vadd.f32 0.0, %v490
        %v492 = vpop.f32.mrf.mxu0
        %v493 = vadd.f32 0.0, %v492
        %494 = vmatprep.mubr.bf16.mxu0 0
        %495 = vmatmul.mubr.bf16.gmra.mxu0 %v404
        %v496 = vpop.f32.mrf.mxu0
        %v497 = vadd.f32 0.0, %v496
        %v498 = vpop.f32.mrf.mxu0
        %v499 = vadd.f32 0.0, %v498
        %v500 = vpop.f32.mrf.mxu0
        %v501 = vadd.f32 0.0, %v500
        %v502 = vpop.f32.mrf.mxu0
        %v503 = vadd.f32 0.0, %v502
        %504 = vmatprep.mubr.bf16.mxu0 0
        %505 = vmatmul.mubr.bf16.gmra.mxu0 %v407
        %v506 = vpop.f32.mrf.mxu0
        %v507 = vadd.f32 0.0, %v506
        %v508 = vpop.f32.mrf.mxu0
        %v509 = vadd.f32 0.0, %v508
        %v510 = vpop.f32.mrf.mxu0
        %v511 = vadd.f32 0.0, %v510
        %v512 = vpop.f32.mrf.mxu0
        %v513 = vadd.f32 0.0, %v512
        %514 = vmatprep.mubr.bf16.mxu0 0
        %515 = vmatmul.mubr.bf16.gmra.mxu0 %v410
        %v516 = vpop.f32.mrf.mxu0
        %v517 = vadd.f32 0.0, %v516
        %v518 = vpop.f32.mrf.mxu0
        %v519 = vadd.f32 0.0, %v518
        %v520 = vpop.f32.mrf.mxu0
        %v521 = vadd.f32 0.0, %v520
        %v522 = vpop.f32.mrf.mxu0
        %v523 = vadd.f32 0.0, %v522
        %524 = vmatprep.mubr.bf16.mxu0 0
        %525 = vmatmul.mubr.bf16.gmra.mxu0 %v413
        %v526 = vpop.f32.mrf.mxu0
        %v527 = vadd.f32 0.0, %v526
        %v528 = vpop.f32.mrf.mxu0
        %v529 = vadd.f32 0.0, %v528
        %v530 = vpop.f32.mrf.mxu0
        %v531 = vadd.f32 0.0, %v530
        %v532 = vpop.f32.mrf.mxu0
        %v533 = vadd.f32 0.0, %v532
        %534 = vdwg.mxu0
        %v535 = vmax.f32 %v457, %v459
        %536 = vmax.xlane.f32.xlu0 %v535
        %v537 = vpop.xlane.xlu0 %536
        %v538 = vmax.f32 %v461, %v463
        %539 = vmax.xlane.f32.xlu0 %v538
        %v540 = vpop.xlane.xlu0 %539
        %v541 = vmax.f32 %v467, %v469
        %542 = vmax.xlane.f32.xlu0 %v541
        %v543 = vpop.xlane.xlu0 %542
        %v544 = vmax.f32 %v471, %v473
        %545 = vmax.xlane.f32.xlu0 %v544
        %v546 = vpop.xlane.xlu0 %545
        %v547 = vmax.f32 %v477, %v479
        %548 = vmax.xlane.f32.xlu0 %v547
        %v549 = vpop.xlane.xlu0 %548
        %v550 = vmax.f32 %v481, %v483
        %551 = vmax.xlane.f32.xlu0 %v550
        %v552 = vpop.xlane.xlu0 %551
        %v553 = vmax.f32 %v487, %v489
        %554 = vmax.xlane.f32.xlu0 %v553
        %v555 = vpop.xlane.xlu0 %554
        %v556 = vmax.f32 %v491, %v493
        %557 = vmax.xlane.f32.xlu0 %v556
        %v558 = vpop.xlane.xlu0 %557
        %v559 = vmax.f32 %v497, %v499
        %560 = vmax.xlane.f32.xlu0 %v559
        %v561 = vpop.xlane.xlu0 %560
        %v562 = vmax.f32 %v501, %v503
        %563 = vmax.xlane.f32.xlu0 %v562
        %v564 = vpop.xlane.xlu0 %563
        %v565 = vmax.f32 %v507, %v509
        %566 = vmax.xlane.f32.xlu0 %v565
        %v567 = vpop.xlane.xlu0 %566
        %v568 = vmax.f32 %v511, %v513
        %569 = vmax.xlane.f32.xlu0 %v568
        %v570 = vpop.xlane.xlu0 %569
        %v571 = vmax.f32 %v517, %v519
        %572 = vmax.xlane.f32.xlu0 %v571
        %v573 = vpop.xlane.xlu0 %572
        %v574 = vmax.f32 %v521, %v523
        %575 = vmax.xlane.f32.xlu0 %v574
        %v576 = vpop.xlane.xlu0 %575
        %v577 = vmax.f32 %v527, %v529
        %578 = vmax.xlane.f32.xlu0 %v577
        %v579 = vpop.xlane.xlu0 %578
        %v580 = vmax.f32 %v531, %v533
        %581 = vmax.xlane.f32.xlu0 %v580
        %v582 = vpop.xlane.xlu0 %581
        %v583 = vsub.f32 %v457, %v537
        %v584 = vsub.f32 %v459, %v537
        %v585 = vsub.f32 %v461, %v540
        %v586 = vsub.f32 %v463, %v540
        %v587 = vsub.f32 %v467, %v543
        %v588 = vsub.f32 %v469, %v543
        %v589 = vsub.f32 %v471, %v546
        %v590 = vsub.f32 %v473, %v546
        %v591 = vsub.f32 %v477, %v549
        %v592 = vsub.f32 %v479, %v549
        %v593 = vsub.f32 %v481, %v552
        %v594 = vsub.f32 %v483, %v552
        %v595 = vsub.f32 %v487, %v555
        %v596 = vsub.f32 %v489, %v555
        %v597 = vsub.f32 %v491, %v558
        %v598 = vsub.f32 %v493, %v558
        %v599 = vsub.f32 %v497, %v561
        %v600 = vsub.f32 %v499, %v561
        %v601 = vsub.f32 %v501, %v564
        %v602 = vsub.f32 %v503, %v564
        %v603 = vsub.f32 %v507, %v567
        %v604 = vsub.f32 %v509, %v567
        %v605 = vsub.f32 %v511, %v570
        %v606 = vsub.f32 %v513, %v570
        %v607 = vsub.f32 %v517, %v573
        %v608 = vsub.f32 %v519, %v573
        %v609 = vsub.f32 %v521, %v576
        %v610 = vsub.f32 %v523, %v576
        %v611 = vsub.f32 %v527, %v579
        %v612 = vsub.f32 %v529, %v579
        %v613 = vsub.f32 %v531, %v582
        %v614 = vsub.f32 %v533, %v582
        %v615 = vmul.f32 %v583, 1.442695
        %v616 = vpow.pop %v615
        %v617 = vmul.f32 %v584, 1.442695
        %v618 = vpow.pop %v617
        %v619 = vmul.f32 %v585, 1.442695
        %v620 = vpow.pop %v619
        %v621 = vmul.f32 %v586, 1.442695
        %v622 = vpow.pop %v621
        %v623 = vmul.f32 %v587, 1.442695
        %v624 = vpow.pop %v623
        %v625 = vmul.f32 %v588, 1.442695
        %v626 = vpow.pop %v625
        %v627 = vmul.f32 %v589, 1.442695
        %v628 = vpow.pop %v627
        %v629 = vmul.f32 %v590, 1.442695
        %v630 = vpow.pop %v629
        %v631 = vmul.f32 %v591, 1.442695
        %v632 = vpow.pop %v631
        %v633 = vmul.f32 %v592, 1.442695
        %v634 = vpow.pop %v633
        %v635 = vmul.f32 %v593, 1.442695
        %v636 = vpow.pop %v635
        %v637 = vmul.f32 %v594, 1.442695
        %v638 = vpow.pop %v637
        %v639 = vmul.f32 %v595, 1.442695
        %v640 = vpow.pop %v639
        %v641 = vmul.f32 %v596, 1.442695
        %v642 = vpow.pop %v641
        %v643 = vmul.f32 %v597, 1.442695
        %v644 = vpow.pop %v643
        %v645 = vmul.f32 %v598, 1.442695
        %v646 = vpow.pop %v645
        %v647 = vmul.f32 %v599, 1.442695
        %v648 = vpow.pop %v647
        %v649 = vmul.f32 %v600, 1.442695
        %v650 = vpow.pop %v649
        %v651 = vmul.f32 %v601, 1.442695
        %v652 = vpow.pop %v651
        %v653 = vmul.f32 %v602, 1.442695
        %v654 = vpow.pop %v653
        %v655 = vmul.f32 %v603, 1.442695
        %v656 = vpow.pop %v655
        %v657 = vmul.f32 %v604, 1.442695
        %v658 = vpow.pop %v657
        %v659 = vmul.f32 %v605, 1.442695
        %v660 = vpow.pop %v659
        %v661 = vmul.f32 %v606, 1.442695
        %v662 = vpow.pop %v661
        %v663 = vmul.f32 %v607, 1.442695
        %v664 = vpow.pop %v663
        %v665 = vmul.f32 %v608, 1.442695
        %v666 = vpow.pop %v665
        %v667 = vmul.f32 %v609, 1.442695
        %v668 = vpow.pop %v667
        %v669 = vmul.f32 %v610, 1.442695
        %v670 = vpow.pop %v669
        %v671 = vmul.f32 %v611, 1.442695
        %v672 = vpow.pop %v671
        %v673 = vmul.f32 %v612, 1.442695
        %v674 = vpow.pop %v673
        %v675 = vmul.f32 %v613, 1.442695
        %v676 = vpow.pop %v675
        %v677 = vmul.f32 %v614, 1.442695
        %v678 = vpow.pop %v677
        %v679 = vadd.f32 %v616, %v618
        %680 = vadd.xlane.f32.xlu0 %v679
        %v681 = vpop.xlane.xlu0 %680
        %v682 = vadd.f32 %v620, %v622
        %683 = vadd.xlane.f32.xlu0 %v682
        %v684 = vpop.xlane.xlu0 %683
        %v685 = vadd.f32 %v624, %v626
        %686 = vadd.xlane.f32.xlu0 %v685
        %v687 = vpop.xlane.xlu0 %686
        %v688 = vadd.f32 %v628, %v630
        %689 = vadd.xlane.f32.xlu0 %v688
        %v690 = vpop.xlane.xlu0 %689
        %v691 = vadd.f32 %v632, %v634
        %692 = vadd.xlane.f32.xlu0 %v691
        %v693 = vpop.xlane.xlu0 %692
        %v694 = vadd.f32 %v636, %v638
        %695 = vadd.xlane.f32.xlu0 %v694
        %v696 = vpop.xlane.xlu0 %695
        %v697 = vadd.f32 %v640, %v642
        %698 = vadd.xlane.f32.xlu0 %v697
        %v699 = vpop.xlane.xlu0 %698
        %v700 = vadd.f32 %v644, %v646
        %701 = vadd.xlane.f32.xlu0 %v700
        %v702 = vpop.xlane.xlu0 %701
        %v703 = vadd.f32 %v648, %v650
        %704 = vadd.xlane.f32.xlu0 %v703
        %v705 = vpop.xlane.xlu0 %704
        %v706 = vadd.f32 %v652, %v654
        %707 = vadd.xlane.f32.xlu0 %v706
        %v708 = vpop.xlane.xlu0 %707
        %v709 = vadd.f32 %v656, %v658
        %710 = vadd.xlane.f32.xlu0 %v709
        %v711 = vpop.xlane.xlu0 %710
        %v712 = vadd.f32 %v660, %v662
        %713 = vadd.xlane.f32.xlu0 %v712
        %v714 = vpop.xlane.xlu0 %713
        %v715 = vadd.f32 %v664, %v666
        %716 = vadd.xlane.f32.xlu0 %v715
        %v717 = vpop.xlane.xlu0 %716
        %v718 = vadd.f32 %v668, %v670
        %719 = vadd.xlane.f32.xlu0 %v718
        %v720 = vpop.xlane.xlu0 %719
        %v721 = vadd.f32 %v672, %v674
        %722 = vadd.xlane.f32.xlu0 %v721
        %v723 = vpop.xlane.xlu0 %722
        %v724 = vadd.f32 %v676, %v678
        %725 = vadd.xlane.f32.xlu0 %v724
        %v726 = vpop.xlane.xlu0 %725
        %v727 = vrcp.pop %v681
        %v728 = vrcp.pop %v684
        %v729 = vrcp.pop %v687
        %v730 = vrcp.pop %v690
        %v731 = vrcp.pop %v693
        %v732 = vrcp.pop %v696
        %v733 = vrcp.pop %v699
        %v734 = vrcp.pop %v702
        %v735 = vrcp.pop %v705
        %v736 = vrcp.pop %v708
        %v737 = vrcp.pop %v711
        %v738 = vrcp.pop %v714
        %v739 = vrcp.pop %v717
        %v740 = vrcp.pop %v720
        %v741 = vrcp.pop %v723
        %v742 = vrcp.pop %v726
        %v743 = vmul.f32 %v616, %v727
        %v744 = vmul.f32 %v618, %v727
        %v745 = vmul.f32 %v620, %v728
        %v746 = vmul.f32 %v622, %v728
        %v747 = vmul.f32 %v624, %v729
        %v748 = vmul.f32 %v626, %v729
        %v749 = vmul.f32 %v628, %v730
        %v750 = vmul.f32 %v630, %v730
        %v751 = vmul.f32 %v632, %v731
        %v752 = vmul.f32 %v634, %v731
        %v753 = vmul.f32 %v636, %v732
        %v754 = vmul.f32 %v638, %v732
        %v755 = vmul.f32 %v640, %v733
        %v756 = vmul.f32 %v642, %v733
        %v757 = vmul.f32 %v644, %v734
        %v758 = vmul.f32 %v646, %v734
        %v759 = vmul.f32 %v648, %v735
        %v760 = vmul.f32 %v650, %v735
        %v761 = vmul.f32 %v652, %v736
        %v762 = vmul.f32 %v654, %v736
        %v763 = vmul.f32 %v656, %v737
        %v764 = vmul.f32 %v658, %v737
        %v765 = vmul.f32 %v660, %v738
        %v766 = vmul.f32 %v662, %v738
        %v767 = vmul.f32 %v664, %v739
        %v768 = vmul.f32 %v666, %v739
        %v769 = vmul.f32 %v668, %v740
        %v770 = vmul.f32 %v670, %v740
        %v771 = vmul.f32 %v672, %v741
        %v772 = vmul.f32 %v674, %v741
        %v773 = vmul.f32 %v676, %v742
        %v774 = vmul.f32 %v678, %v742
        %v775 = vpack.c.bf16 %v745, %v743
        %v776 = vpack.c.bf16 %v746, %v744
        %v777 = vpack.c.bf16 %v749, %v747
        %v778 = vpack.c.bf16 %v750, %v748
        %v779 = vpack.c.bf16 %v753, %v751
        %v780 = vpack.c.bf16 %v754, %v752
        %v781 = vpack.c.bf16 %v757, %v755
        %v782 = vpack.c.bf16 %v758, %v756
        %v783 = vpack.c.bf16 %v761, %v759
        %v784 = vpack.c.bf16 %v762, %v760
        %v785 = vpack.c.bf16 %v765, %v763
        %v786 = vpack.c.bf16 %v766, %v764
        %v787 = vpack.c.bf16 %v769, %v767
        %v788 = vpack.c.bf16 %v770, %v768
        %v789 = vpack.c.bf16 %v773, %v771
        %v790 = vpack.c.bf16 %v774, %v772
        %v807 = vunpack.c.l.b16 %v294
        %v808 = vunpack.c.l.b16 %v295
        %v809 = vunpack.c.l.b16 %v296
        %v810 = vunpack.c.l.b16 %v297
        %v811 = vunpack.c.l.b16 %v298
        %v812 = vunpack.c.l.b16 %v299
        %v813 = vunpack.c.l.b16 %v300
        %v814 = vunpack.c.l.b16 %v301
        %v815 = vunpack.c.l.b16 %v302
        %v816 = vunpack.c.l.b16 %v303
        %v817 = vunpack.c.l.b16 %v304
        %v818 = vunpack.c.l.b16 %v305
        %v819 = vunpack.c.l.b16 %v306
        %v820 = vunpack.c.l.b16 %v307
        %v821 = vunpack.c.l.b16 %v308
        %v822 = vunpack.c.l.b16 %v309
        %v823 = vpack.c.b16 %v808, %v807
        %v824 = vpack.c.b16 %v810, %v809
        %v825 = vpack.c.b16 %v812, %v811
        %v826 = vpack.c.b16 %v814, %v813
        %v827 = vpack.c.b16 %v816, %v815
        %v828 = vpack.c.b16 %v818, %v817
        %v829 = vpack.c.b16 %v820, %v819
        %v830 = vpack.c.b16 %v822, %v821
        %v832 = vsel %vm390, %v823, 0
        %v835 = vsel %vm390, %v824, 0
        %v838 = vsel %vm390, %v825, 0
        %v841 = vsel %vm390, %v826, 0
        %v844 = vsel %vm390, %v827, 0
        %v847 = vsel %vm390, %v828, 0
        %v850 = vsel %vm390, %v829, 0
        %v853 = vsel %vm390, %v830, 0
        %855 = vmatprep.subr.bf16.mxu0 0
        %856 = vmatpush1.bf16.msra.mxu0 0
        %857 = vmatprep.subr.bf16.mxu0 0
        %858 = vmatpush1.bf16.msra.mxu0 0
        %859 = vmatprep.subr.bf16.mxu0 0
        %860 = vmatpush1.bf16.msra.mxu0 0
        %861 = vmatprep.subr.bf16.mxu0 0
        %862 = vmatpush1.bf16.msra.mxu0 0
        %863 = vmatprep.subr.bf16.mxu0 0
        %864 = vmatpush1.bf16.msra.mxu0 0
        %865 = vmatprep.subr.bf16.mxu0 0
        %866 = vmatpush1.bf16.msra.mxu0 0
        %867 = vmatprep.subr.bf16.mxu0 0
        %868 = vmatpush1.bf16.msra.mxu0 0
        %869 = vmatprep.subr.bf16.mxu0 %v420
        %870 = vmatpush1.bf16.msra.mxu0 %v417
        %871 = vmatprep.subr.bf16.mxu0 0
        %872 = vmatpush2.bf16.msra.mxu0 0
        %873 = vmatprep.subr.bf16.mxu0 0
        %874 = vmatpush2.bf16.msra.mxu0 0
        %875 = vmatprep.subr.bf16.mxu0 0
        %876 = vmatpush2.bf16.msra.mxu0 0
        %877 = vmatprep.subr.bf16.mxu0 0
        %878 = vmatpush2.bf16.msra.mxu0 0
        %879 = vmatprep.subr.bf16.mxu0 0
        %880 = vmatpush2.bf16.msra.mxu0 0
        %881 = vmatprep.subr.bf16.mxu0 0
        %882 = vmatpush2.bf16.msra.mxu0 0
        %883 = vmatprep.subr.bf16.mxu0 0
        %884 = vmatpush2.bf16.msra.mxu0 0
        %885 = vmatprep.subr.bf16.mxu0 0
        %886 = vmatpush2.bf16.msra.mxu0 0
        %887 = vmatprep.mubr.bf16.mxu0 0
        %888 = vmatmul.mubr.bf16.gmra.mxu0 %v832
        %v889 = vpop.f32.mrf.mxu0
        %v890 = vadd.f32 0.0, %v889
        %v891 = vpop.f32.mrf.mxu0
        %v892 = vadd.f32 0.0, %v891
        %v893 = vpop.f32.mrf.mxu0
        %v894 = vadd.f32 0.0, %v893
        %v895 = vpop.f32.mrf.mxu0
        %v896 = vadd.f32 0.0, %v895
        %897 = vmatprep.mubr.bf16.mxu0 0
        %898 = vmatmul.mubr.bf16.gmra.mxu0 %v835
        %v899 = vpop.f32.mrf.mxu0
        %v900 = vadd.f32 0.0, %v899
        %v901 = vpop.f32.mrf.mxu0
        %v902 = vadd.f32 0.0, %v901
        %v903 = vpop.f32.mrf.mxu0
        %v904 = vadd.f32 0.0, %v903
        %v905 = vpop.f32.mrf.mxu0
        %v906 = vadd.f32 0.0, %v905
        %907 = vmatprep.mubr.bf16.mxu0 0
        %908 = vmatmul.mubr.bf16.gmra.mxu0 %v838
        %v909 = vpop.f32.mrf.mxu0
        %v910 = vadd.f32 0.0, %v909
        %v911 = vpop.f32.mrf.mxu0
        %v912 = vadd.f32 0.0, %v911
        %v913 = vpop.f32.mrf.mxu0
        %v914 = vadd.f32 0.0, %v913
        %v915 = vpop.f32.mrf.mxu0
        %v916 = vadd.f32 0.0, %v915
        %917 = vmatprep.mubr.bf16.mxu0 0
        %918 = vmatmul.mubr.bf16.gmra.mxu0 %v841
        %v919 = vpop.f32.mrf.mxu0
        %v920 = vadd.f32 0.0, %v919
        %v921 = vpop.f32.mrf.mxu0
        %v922 = vadd.f32 0.0, %v921
        %v923 = vpop.f32.mrf.mxu0
        %v924 = vadd.f32 0.0, %v923
        %v925 = vpop.f32.mrf.mxu0
        %v926 = vadd.f32 0.0, %v925
        %927 = vmatprep.mubr.bf16.mxu0 0
        %928 = vmatmul.mubr.bf16.gmra.mxu0 %v844
        %v929 = vpop.f32.mrf.mxu0
        %v930 = vadd.f32 0.0, %v929
        %v931 = vpop.f32.mrf.mxu0
        %v932 = vadd.f32 0.0, %v931
        %v933 = vpop.f32.mrf.mxu0
        %v934 = vadd.f32 0.0, %v933
        %v935 = vpop.f32.mrf.mxu0
        %v936 = vadd.f32 0.0, %v935
        %937 = vmatprep.mubr.bf16.mxu0 0
        %938 = vmatmul.mubr.bf16.gmra.mxu0 %v847
        %v939 = vpop.f32.mrf.mxu0
        %v940 = vadd.f32 0.0, %v939
        %v941 = vpop.f32.mrf.mxu0
        %v942 = vadd.f32 0.0, %v941
        %v943 = vpop.f32.mrf.mxu0
        %v944 = vadd.f32 0.0, %v943
        %v945 = vpop.f32.mrf.mxu0
        %v946 = vadd.f32 0.0, %v945
        %947 = vmatprep.mubr.bf16.mxu0 0
        %948 = vmatmul.mubr.bf16.gmra.mxu0 %v850
        %v949 = vpop.f32.mrf.mxu0
        %v950 = vadd.f32 0.0, %v949
        %v951 = vpop.f32.mrf.mxu0
        %v952 = vadd.f32 0.0, %v951
        %v953 = vpop.f32.mrf.mxu0
        %v954 = vadd.f32 0.0, %v953
        %v955 = vpop.f32.mrf.mxu0
        %v956 = vadd.f32 0.0, %v955
        %957 = vmatprep.mubr.bf16.mxu0 0
        %958 = vmatmul.mubr.bf16.gmra.mxu0 %v853
        %v959 = vpop.f32.mrf.mxu0
        %v960 = vadd.f32 0.0, %v959
        %v961 = vpop.f32.mrf.mxu0
        %v962 = vadd.f32 0.0, %v961
        %v963 = vpop.f32.mrf.mxu0
        %v964 = vadd.f32 0.0, %v963
        %v965 = vpop.f32.mrf.mxu0
        %v966 = vadd.f32 0.0, %v965
        %967 = vdwg.mxu0
        %v968 = vpack.c.bf16 %v894, %v890
        %v969 = vpack.c.bf16 %v896, %v892
        %v970 = vpack.c.bf16 %v904, %v900
        %v971 = vpack.c.bf16 %v906, %v902
        %v972 = vpack.c.bf16 %v914, %v910
        %v973 = vpack.c.bf16 %v916, %v912
        %v974 = vpack.c.bf16 %v924, %v920
        %v975 = vpack.c.bf16 %v926, %v922
        %v976 = vpack.c.bf16 %v934, %v930
        %v977 = vpack.c.bf16 %v936, %v932
        %v978 = vpack.c.bf16 %v944, %v940
        %v979 = vpack.c.bf16 %v946, %v942
        %v980 = vpack.c.bf16 %v954, %v950
        %v981 = vpack.c.bf16 %v956, %v952
        %v982 = vpack.c.bf16 %v964, %v960
        %v983 = vpack.c.bf16 %v966, %v962
        %984 = vmatprep.subr.bf16.mxu0 %v790
        %985 = vmatpush1.bf16.xpose.msra.mxu0 %v789
        %986 = vmatprep.subr.bf16.mxu0 %v788
        %987 = vmatpush1.bf16.xpose.msra.mxu0 %v787
        %988 = vmatprep.subr.bf16.mxu0 %v786
        %989 = vmatpush1.bf16.xpose.msra.mxu0 %v785
        %990 = vmatprep.subr.bf16.mxu0 %v784
        %991 = vmatpush1.bf16.xpose.msra.mxu0 %v783
        %992 = vmatprep.subr.bf16.mxu0 %v782
        %993 = vmatpush1.bf16.xpose.msra.mxu0 %v781
        %994 = vmatprep.subr.bf16.mxu0 %v780
        %995 = vmatpush1.bf16.xpose.msra.mxu0 %v779
        %996 = vmatprep.subr.bf16.mxu0 %v778
        %997 = vmatpush1.bf16.xpose.msra.mxu0 %v777
        %998 = vmatprep.subr.bf16.mxu0 %v776
        %999 = vmatpush1.bf16.xpose.msra.mxu0 %v775
        %1000 = vmatprep.subr.bf16.mxu0 0
        %1001 = vmatpush2.bf16.xpose.msra.mxu0 0
        %1002 = vmatprep.subr.bf16.mxu0 0
        %1003 = vmatpush2.bf16.xpose.msra.mxu0 0
        %1004 = vmatprep.subr.bf16.mxu0 0
        %1005 = vmatpush2.bf16.xpose.msra.mxu0 0
        %1006 = vmatprep.subr.bf16.mxu0 0
        %1007 = vmatpush2.bf16.xpose.msra.mxu0 0
        %1008 = vmatprep.subr.bf16.mxu0 0
        %1009 = vmatpush2.bf16.xpose.msra.mxu0 0
        %1010 = vmatprep.subr.bf16.mxu0 0
        %1011 = vmatpush2.bf16.xpose.msra.mxu0 0
        %1012 = vmatprep.subr.bf16.mxu0 0
        %1013 = vmatpush2.bf16.xpose.msra.mxu0 0
        %1014 = vmatprep.subr.bf16.mxu0 0
        %1015 = vmatpush2.bf16.xpose.msra.mxu0 0
        %1016 = vmatprep.mubr.bf16.mxu0 %v969
        %1017 = vmatmul.mubr.bf16.gmra.mxu0 %v968
        %v1018 = vpop.f32.mrf.mxu0
        %v1019 = vadd.f32 0.0, %v1018
        %v1020 = vpop.f32.mrf.mxu0
        %v1021 = vpop.f32.mrf.mxu0
        %v1022 = vadd.f32 0.0, %v1021
        %v1023 = vpop.f32.mrf.mxu0
        %1024 = vmatprep.mubr.bf16.mxu0 %v971
        %1025 = vmatmul.mubr.bf16.gmra.mxu0 %v970
        %v1026 = vpop.f32.mrf.mxu0
        %v1027 = vadd.f32 0.0, %v1026
        %v1028 = vpop.f32.mrf.mxu0
        %v1029 = vpop.f32.mrf.mxu0
        %v1030 = vadd.f32 0.0, %v1029
        %v1031 = vpop.f32.mrf.mxu0
        %1032 = vmatprep.mubr.bf16.mxu0 %v973
        %1033 = vmatmul.mubr.bf16.gmra.mxu0 %v972
        %v1034 = vpop.f32.mrf.mxu0
        %v1035 = vadd.f32 0.0, %v1034
        %v1036 = vpop.f32.mrf.mxu0
        %v1037 = vpop.f32.mrf.mxu0
        %v1038 = vadd.f32 0.0, %v1037
        %v1039 = vpop.f32.mrf.mxu0
        %1040 = vmatprep.mubr.bf16.mxu0 %v975
        %1041 = vmatmul.mubr.bf16.gmra.mxu0 %v974
        %v1042 = vpop.f32.mrf.mxu0
        %v1043 = vadd.f32 0.0, %v1042
        %v1044 = vpop.f32.mrf.mxu0
        %v1045 = vpop.f32.mrf.mxu0
        %v1046 = vadd.f32 0.0, %v1045
        %v1047 = vpop.f32.mrf.mxu0
        %1048 = vmatprep.mubr.bf16.mxu0 %v977
        %1049 = vmatmul.mubr.bf16.gmra.mxu0 %v976
        %v1050 = vpop.f32.mrf.mxu0
        %v1051 = vadd.f32 0.0, %v1050
        %v1052 = vpop.f32.mrf.mxu0
        %v1053 = vpop.f32.mrf.mxu0
        %v1054 = vadd.f32 0.0, %v1053
        %v1055 = vpop.f32.mrf.mxu0
        %1056 = vmatprep.mubr.bf16.mxu0 %v979
        %1057 = vmatmul.mubr.bf16.gmra.mxu0 %v978
        %v1058 = vpop.f32.mrf.mxu0
        %v1059 = vadd.f32 0.0, %v1058
        %v1060 = vpop.f32.mrf.mxu0
        %v1061 = vpop.f32.mrf.mxu0
        %v1062 = vadd.f32 0.0, %v1061
        %v1063 = vpop.f32.mrf.mxu0
        %1064 = vmatprep.mubr.bf16.mxu0 %v981
        %1065 = vmatmul.mubr.bf16.gmra.mxu0 %v980
        %v1066 = vpop.f32.mrf.mxu0
        %v1067 = vadd.f32 0.0, %v1066
        %v1068 = vpop.f32.mrf.mxu0
        %v1069 = vpop.f32.mrf.mxu0
        %v1070 = vadd.f32 0.0, %v1069
        %v1071 = vpop.f32.mrf.mxu0
        %1072 = vmatprep.mubr.bf16.mxu0 %v983
        %1073 = vmatmul.mubr.bf16.gmra.mxu0 %v982
        %v1074 = vpop.f32.mrf.mxu0
        %v1075 = vadd.f32 0.0, %v1074
        %v1076 = vpop.f32.mrf.mxu0
        %v1077 = vpop.f32.mrf.mxu0
        %v1078 = vadd.f32 0.0, %v1077
        %v1079 = vpop.f32.mrf.mxu0
        %1080 = vdwg.mxu0
        %v1081 = vmul.f32 %v1019, %v328
        %v1082 = vmul.f32 %v1022, %v329
        %v1083 = vmul.f32 %v1027, %v330
        %v1084 = vmul.f32 %v1030, %v331
        %v1085 = vmul.f32 %v1035, %v332
        %v1086 = vmul.f32 %v1038, %v333
        %v1087 = vmul.f32 %v1043, %v334
        %v1088 = vmul.f32 %v1046, %v335
        %v1089 = vmul.f32 %v1051, %v336
        %v1090 = vmul.f32 %v1054, %v337
        %v1091 = vmul.f32 %v1059, %v338
        %v1092 = vmul.f32 %v1062, %v339
        %v1093 = vmul.f32 %v1067, %v340
        %v1094 = vmul.f32 %v1070, %v341
        %v1095 = vmul.f32 %v1075, %v342
        %v1096 = vmul.f32 %v1078, %v343
        %v1097 = vpack.c.bf16 %v1082, %v1081
        %v1098 = vpack.c.bf16 %v1084, %v1083
        %v1099 = vpack.c.bf16 %v1086, %v1085
        %v1100 = vpack.c.bf16 %v1088, %v1087
        %v1101 = vpack.c.bf16 %v1090, %v1089
        %v1102 = vpack.c.bf16 %v1092, %v1091
        %v1103 = vpack.c.bf16 %v1094, %v1093
        %v1104 = vpack.c.bf16 %v1096, %v1095
        %1105 = vmatprep.subr.bf16.mxu0 0
        %1106 = vmatpush1.bf16.msra.mxu0 %v1104
        %1107 = vmatprep.subr.bf16.mxu0 0
        %1108 = vmatpush1.bf16.msra.mxu0 %v1103
        %1109 = vmatprep.subr.bf16.mxu0 0
        %1110 = vmatpush1.bf16.msra.mxu0 %v1102
        %1111 = vmatprep.subr.bf16.mxu0 0
        %1112 = vmatpush1.bf16.msra.mxu0 %v1101
        %1113 = vmatprep.subr.bf16.mxu0 0
        %1114 = vmatpush1.bf16.msra.mxu0 %v1100
        %1115 = vmatprep.subr.bf16.mxu0 0
        %1116 = vmatpush1.bf16.msra.mxu0 %v1099
        %1117 = vmatprep.subr.bf16.mxu0 0
        %1118 = vmatpush1.bf16.msra.mxu0 %v1098
        %1119 = vmatprep.subr.bf16.mxu0 0
        %1120 = vmatpush1.bf16.msra.mxu0 %v1097
        %1121 = vmatprep.subr.bf16.mxu0 0
        %1122 = vmatpush2.bf16.msra.mxu0 0
        %1123 = vmatprep.subr.bf16.mxu0 0
        %1124 = vmatpush2.bf16.msra.mxu0 0
        %1125 = vmatprep.subr.bf16.mxu0 0
        %1126 = vmatpush2.bf16.msra.mxu0 0
        %1127 = vmatprep.subr.bf16.mxu0 0
        %1128 = vmatpush2.bf16.msra.mxu0 0
        %1129 = vmatprep.subr.bf16.mxu0 0
        %1130 = vmatpush2.bf16.msra.mxu0 0
        %1131 = vmatprep.subr.bf16.mxu0 0
        %1132 = vmatpush2.bf16.msra.mxu0 0
        %1133 = vmatprep.subr.bf16.mxu0 0
        %1134 = vmatpush2.bf16.msra.mxu0 0
        %1135 = vmatprep.subr.bf16.mxu0 0
        %1136 = vmatpush2.bf16.msra.mxu0 0
        %1137 = vmatprep.mubr.bf16.mxu0 0
        %1138 = vmatmul.mubr.bf16.gmra.mxu0 %v326
        %v1139 = vpop.f32.mrf.mxu0
        %v1140 = vadd.f32 0.0, %v1139
        %v1141 = vpop.f32.mrf.mxu0
        %v1142 = vpop.f32.mrf.mxu0
        %v1143 = vpop.f32.mrf.mxu0
        %1144 = vdwg.mxu0
        %v1145 = vpack.c.bf16 %v1140, %v1140
        %v1162 = vunpack.c.l.b16 %v310
        %v1163 = vunpack.c.l.b16 %v311
        %v1164 = vunpack.c.l.b16 %v312
        %v1165 = vunpack.c.l.b16 %v313
        %v1166 = vunpack.c.l.b16 %v314
        %v1167 = vunpack.c.l.b16 %v315
        %v1168 = vunpack.c.l.b16 %v316
        %v1169 = vunpack.c.l.b16 %v317
        %v1170 = vunpack.c.l.b16 %v318
        %v1171 = vunpack.c.l.b16 %v319
        %v1172 = vunpack.c.l.b16 %v320
        %v1173 = vunpack.c.l.b16 %v321
        %v1174 = vunpack.c.l.b16 %v322
        %v1175 = vunpack.c.l.b16 %v323
        %v1176 = vunpack.c.l.b16 %v324
        %v1177 = vunpack.c.l.b16 %v325
        %v1178 = vpack.c.b16 %v1163, %v1162
        %v1179 = vpack.c.b16 %v1165, %v1164
        %v1180 = vpack.c.b16 %v1167, %v1166
        %v1181 = vpack.c.b16 %v1169, %v1168
        %v1182 = vpack.c.b16 %v1171, %v1170
        %v1183 = vpack.c.b16 %v1173, %v1172
        %v1184 = vpack.c.b16 %v1175, %v1174
        %v1185 = vpack.c.b16 %v1177, %v1176
        %1194 = vmatprep.subr.bf16.mxu0 0
        %1195 = vmatpush1.bf16.msra.mxu0 %v1185
        %1196 = vmatprep.subr.bf16.mxu0 0
        %1197 = vmatpush1.bf16.msra.mxu0 %v1184
        %1198 = vmatprep.subr.bf16.mxu0 0
        %1199 = vmatpush1.bf16.msra.mxu0 %v1183
        %1200 = vmatprep.subr.bf16.mxu0 0
        %1201 = vmatpush1.bf16.msra.mxu0 %v1182
        %1202 = vmatprep.subr.bf16.mxu0 0
        %1203 = vmatpush1.bf16.msra.mxu0 %v1181
        %1204 = vmatprep.subr.bf16.mxu0 0
        %1205 = vmatpush1.bf16.msra.mxu0 %v1180
        %1206 = vmatprep.subr.bf16.mxu0 0
        %1207 = vmatpush1.bf16.msra.mxu0 %v1179
        %1208 = vmatprep.subr.bf16.mxu0 0
        %1209 = vmatpush1.bf16.msra.mxu0 %v1178
        %1210 = vmatprep.subr.bf16.mxu0 0
        %1211 = vmatpush2.bf16.msra.mxu0 0
        %1212 = vmatprep.subr.bf16.mxu0 0
        %1213 = vmatpush2.bf16.msra.mxu0 0
        %1214 = vmatprep.subr.bf16.mxu0 0
        %1215 = vmatpush2.bf16.msra.mxu0 0
        %1216 = vmatprep.subr.bf16.mxu0 0
        %1217 = vmatpush2.bf16.msra.mxu0 0
        %1218 = vmatprep.subr.bf16.mxu0 0
        %1219 = vmatpush2.bf16.msra.mxu0 0
        %1220 = vmatprep.subr.bf16.mxu0 0
        %1221 = vmatpush2.bf16.msra.mxu0 0
        %1222 = vmatprep.subr.bf16.mxu0 0
        %1223 = vmatpush2.bf16.msra.mxu0 0
        %1224 = vmatprep.subr.bf16.mxu0 0
        %1225 = vmatpush2.bf16.msra.mxu0 0
        %1226 = vmatprep.mubr.bf16.mxu0 0
        %1227 = vmatmul.mubr.bf16.gmra.mxu0 %v1145
        %v1228 = vpop.f32.mrf.mxu0
        %v1229 = vadd.f32 0.0, %v1228
        %v1230 = vpop.f32.mrf.mxu0
        %v1231 = vpop.f32.mrf.mxu0
        %v1232 = vpop.f32.mrf.mxu0
        %1233 = vdwg.mxu0
        %1235 = vset.pattern.permute.xlu0 0
        %1236 = vperm.xlu0 %1235, %v1229
        %v1237 = vpop.permute.xlu0 %1236
        %v1239 = vlaneseq
        %v1240 = vshrl.u32 %v1239, 7
        %v1241 = vsub.s32 0, %v1240
        %v1242 = vrot.slane %v344, %v1241
        %v1243 = vlaneseq
        %v1244 = vshrl.u32 %v1243, 7
        %v1245 = vsub.s32 4, %v1244
        %v1246 = vrot.slane %v344, %v1245
        %v1249 = vlaneseq
        %v1250 = vshrl.u32 %v1249, 7
        %v1251 = vsub.s32 0, %v1250
        %v1252 = vrot.slane %v1242, %v1251
        %v1253 = vlaneseq
        %v1254 = vshrl.u32 %v1253, 7
        %v1255 = vsub.s32 0, %v1254
        %v1256 = vrot.slane %v1246, %v1255
        %v1257 = vmul.f32 %v1237, %v1252
        %v1258 = vmul.f32 %v1237, %v1256
        %1259 = vset.pattern.permute.xlu0 1
        %1260 = vperm.xlu0 %1259, %v1229
        %v1261 = vpop.permute.xlu0 %1260
        %v1263 = vlaneseq
        %v1264 = vshrl.u32 %v1263, 7
        %v1265 = vsub.s32 1, %v1264
        %v1266 = vrot.slane %v344, %v1265
        %v1267 = vlaneseq
        %v1268 = vshrl.u32 %v1267, 7
        %v1269 = vsub.s32 5, %v1268
        %v1270 = vrot.slane %v344, %v1269
        %v1273 = vlaneseq
        %v1274 = vshrl.u32 %v1273, 7
        %v1275 = vsub.s32 1, %v1274
        %v1276 = vrot.slane %v1266, %v1275
        %v1277 = vlaneseq
        %v1278 = vshrl.u32 %v1277, 7
        %v1279 = vsub.s32 1, %v1278
        %v1280 = vrot.slane %v1270, %v1279
        %v1281 = vmul.f32 %v1261, %v1276
        %v1282 = vmul.f32 %v1261, %v1280
        %v1283 = vadd.f32 %v1257, %v1281
        %v1284 = vadd.f32 %v1258, %v1282
        %1285 = vset.pattern.permute.xlu0 2
        %1286 = vperm.xlu0 %1285, %v1229
        %v1287 = vpop.permute.xlu0 %1286
        %v1289 = vlaneseq
        %v1290 = vshrl.u32 %v1289, 7
        %v1291 = vsub.s32 2, %v1290
        %v1292 = vrot.slane %v344, %v1291
        %v1293 = vlaneseq
        %v1294 = vshrl.u32 %v1293, 7
        %v1295 = vsub.s32 6, %v1294
        %v1296 = vrot.slane %v344, %v1295
        %v1299 = vlaneseq
        %v1300 = vshrl.u32 %v1299, 7
        %v1301 = vsub.s32 2, %v1300
        %v1302 = vrot.slane %v1292, %v1301
        %v1303 = vlaneseq
        %v1304 = vshrl.u32 %v1303, 7
        %v1305 = vsub.s32 2, %v1304
        %v1306 = vrot.slane %v1296, %v1305
        %v1307 = vmul.f32 %v1287, %v1302
        %v1308 = vmul.f32 %v1287, %v1306
        %v1309 = vadd.f32 %v1283, %v1307
        %v1310 = vadd.f32 %v1284, %v1308
        %1311 = vset.pattern.permute.xlu0 3
        %1312 = vperm.xlu0 %1311, %v1229
        %v1313 = vpop.permute.xlu0 %1312
        %v1315 = vlaneseq
        %v1316 = vshrl.u32 %v1315, 7
        %v1317 = vsub.s32 3, %v1316
        %v1318 = vrot.slane %v344, %v1317
        %v1319 = vlaneseq
        %v1320 = vshrl.u32 %v1319, 7
        %v1321 = vsub.s32 7, %v1320
        %v1322 = vrot.slane %v344, %v1321
        %v1325 = vlaneseq
        %v1326 = vshrl.u32 %v1325, 7
        %v1327 = vsub.s32 3, %v1326
        %v1328 = vrot.slane %v1318, %v1327
        %v1329 = vlaneseq
        %v1330 = vshrl.u32 %v1329, 7
        %v1331 = vsub.s32 3, %v1330
        %v1332 = vrot.slane %v1322, %v1331
        %v1333 = vmul.f32 %v1313, %v1328
        %v1334 = vmul.f32 %v1313, %v1332
        %v1335 = vadd.f32 %v1309, %v1333
        %v1336 = vadd.f32 %v1310, %v1334
        %1338 = vset.pattern.permute.xlu0 0
        %1339 = vperm.xlu0 %1338, %v327
        %v1340 = vpop.permute.xlu0 %1339
        %v1342 = vadd.f32 %v1335, %v1340
        %v1343 = vadd.f32 %v1336, %v1340
        %v1346 = vcombine.low %v1342, %v1343
        %1348 = vst [vmem:[%s271] sm:$0xff] %v1346
        %s1349 = sand.u32 %s181, 1
        %s1350 = scalar_lea.sflag [#allocation3], %s1349
        %s1351 = sand.u32 %s181, 1
        %s1352 = smul.addr %s1351, 8
        %s1353 = scalar_lea.vmem [#allocation2], %s1352
        // Predicated region
        $region49: #{tpu_custom_call.1} parent=47 // pred_check
          %p1354 = pneg %p191
        $region50: #{tpu_custom_call.1} parent=47 // pred_check_branch
          %1356 = sbr.rel (%p1354) target = $region52
        $region51: #{tpu_custom_call.1} parent=47 // pred_region
          %s1358 = ssub.s32 128, 128
          %1359 = vsyncadd %s1350, %s1358
          %s1360 = smul.addr %s21, 2
          %s1361 = smul.addr %s1360, 64
          %s1362 = scalar_lea.hbm %s7, %s1361
          %s1364 = sshll.u32 %s1353, 4
          %s1365 = int_to_ptr.vmem [resolvable:$true] %s1364
          %1367 = dma.vmem_to_hbm [thread:$0]  %s1365, 128, %s1362, %s1350
        $region52: #{tpu_custom_call.1} parent=47 // pred_fallthru
          _
      $region48: #{tpu_custom_call.1} parent=5 // pred_fallthru
        _
      %p1368 = scmp.le.s32.totalorder 2, %s16
      // Predicated region
      $region53: #{tpu_custom_call.1} parent=5 // pred_check
        %p1369 = pneg %p1368
      $region54: #{tpu_custom_call.1} parent=5 // pred_check_branch
        %1371 = sbr.rel (%p1369) target = $region56
      $region55: #{tpu_custom_call.1} parent=5 // pred_region
        %s1372 = ssub.s32 %s16, 2
        // Predicated region
        $region57: #{tpu_custom_call.1} parent=55 // pred_check
          %p1373 = pneg %p197
        $region58: #{tpu_custom_call.1} parent=55 // pred_check_branch
          %1375 = sbr.rel (%p1373) target = $region60
        $region59: #{tpu_custom_call.1} parent=55 // pred_region
          %s1376 = sand.u32 %s182, 1
          %s1377 = scalar_lea.sflag [#allocation3], %s1376
          %s1378 = sand.u32 %s182, 1
          %s1379 = smul.addr %s1378, 8
          %s1380 = scalar_lea.vmem [#allocation2], %s1379
          %1381 = dma.done %s1377, 128
        $region60: #{tpu_custom_call.1} parent=55 // pred_fallthru
          _
      $region56: #{tpu_custom_call.1} parent=5 // pred_fallthru
        _
    $region6: #{tpu_custom_call.1} parent=1 // loop_footer
      %s20 = sadd.s32 1, %s16
    $region7: #{tpu_custom_call.1} parent=1 // loop_footer_branch
      %15 = sbr.rel target = $region3
    $region8: #{tpu_custom_call.1} parent=1 // loop_exit
      _
    %1382 = vsyncpa [#allocation3], 1
    %s1383 = scalar_lea.sflag [#allocation3], 1
    %1384 = vsyncpa %s1383, 1

</llo_original>
